<compile_context>
chip_gen: v5e
topology: v5e:2x2
jax: 0.10.0
libtpu: 0.0.40
codegen_flags: <defaults>
</compile_context>

<pallas_src>
import jax
import jax.numpy as jnp
from jax.experimental import pallas as pl
from jax.experimental.pallas import tpu as pltpu

NUM_CLASSES = 28
IN_FEATURES = 1024   # 32 x 32 grayscale character image
OUT_PAD = 128        # lane-dense padded readout width


# ---------------------------------------------------------------------------
# Kernels
# ---------------------------------------------------------------------------

def _euler_cell_kernel(x_ref, s_ref, wi_ref, bi_ref, wkr_ref, out_ref):
    """Faithful EulerReservoirCell.forward for arbitrary states (f32)."""
    states = s_ref[...]                                             # (Bb, U)
    hin = jnp.tanh(
        jnp.dot(x_ref[...], wi_ref[...], preferred_element_type=jnp.float32)
        + bi_ref[...]
    )                                                               # (Bb, U)
    # Single K=2U matmul instead of two K=U matmuls (fills the 256-deep MXU).
    hs = jnp.concatenate([hin, states], axis=-1)                    # (Bb, 2U)
    net = jnp.dot(hs, wkr_ref[...], preferred_element_type=jnp.float32)
    out_ref[...] = states + jnp.float32(0.01) * jnp.tanh(net)


def _eusn_model_kernel(x_ref, wi_ref, bi_ref, wk_ref, wo_ref, bo_ref, out_ref):
    """Full EuSN forward with zero initial states + padded linear readout."""
    hin = jnp.tanh(
        jnp.dot(x_ref[...], wi_ref[...], preferred_element_type=jnp.float32)
        + bi_ref[...]
    )                                                               # (Bb, U)
    # states == 0  =>  states @ Wr == 0 and `states +` is a no-op (exact).
    res = jnp.float32(0.01) * jnp.tanh(
        jnp.dot(hin.astype(wk_ref.dtype), wk_ref[...],
                preferred_element_type=jnp.float32)
    )                                                               # (Bb, U)
    out_ref[...] = (
        jnp.dot(res.astype(wo_ref.dtype), wo_ref[...],
                preferred_element_type=jnp.float32)
        + bo_ref[...]
    )                                                               # (Bb, 128)


# ---------------------------------------------------------------------------
# Wrapper helpers
# ---------------------------------------------------------------------------

def _round_up(x, m):
    return (x + m - 1) // m * m


def _batch_blocking(B, max_block_b=512):
    """Pick (padded_B, block_b) minimizing padding while keeping blocks large.

    - Small batches run as ONE full-batch block: no padding, no dead DMA rows
      (a block dim equal to the full array dim satisfies the (8,128) rule even
      when B % 8 != 0).
    - Large batches (>= 512 rows) pad only up to a multiple of 8 and use the
      largest 8-aligned divisor <= max_block_b with >= 2 grid steps, so v7x's
      two TensorCores both get work and the x stream has ~no wasted bytes.
    - Pathological sizes (no decent divisor) fall back to padding up to a
      multiple of an aligned 256-row block.
    """
    if B < 512 and B <= max_block_b:
        return B, B                      # single full-batch block, no padding
    Bp = _round_up(B, 8)
    best = 0
    for nblocks in range(2, Bp // 8 + 1):
        blk = Bp // nblocks
        if Bp % nblocks == 0 and blk % 8 == 0 and blk <= max_block_b:
            best = blk
            break                         # nblocks ascending => largest block
    if best >= min(128, max_block_b):
        return Bp, best
    # Fallback (rare awkward sizes): pad to a multiple of a 256-row block.
    block_b = min(max_block_b, 256)
    return _round_up(B, block_b), block_b


def _pad_batch(a, Bp):
    B = a.shape[0]
    if Bp == B:
        return a
    pad = ((0, Bp - B),) + ((0, 0),) * (a.ndim - 1)
    return jnp.pad(a, pad)


def _vmem_limit_bytes(block_b, weight_elems, io_row_elems):
    """Resident weights are single-buffered; streamed x/out blocks are
    double-buffered. 4 B/elem (conservative for the bf16 path) + headroom
    for intermediates / compiler scratch, capped below v7x's 64 MiB."""
    weights = weight_elems * 4
    io = 2 * block_b * io_row_elems * 4
    return min(int(weights + io) + (8 << 20), 60 << 20)


def _resident(shape):
    """Weight block: same block index every grid step -> stays VMEM-resident.
    Single buffer (constant blocks don't need double-buffering)."""
    try:
        return pl.BlockSpec(shape, lambda i: (0, 0),
                            pipeline_mode=pl.Buffered(1))
    except TypeError:  # very old JAX without pipeline_mode: default buffering
        return pl.BlockSpec(shape, lambda i: (0, 0))


# ---------------------------------------------------------------------------
# Parameter preprocessing (done once, not per forward call)
# ---------------------------------------------------------------------------

def prepare_eusn_params(params, *, compute_dtype=jnp.float32):
    """Pad the 28-wide readout to 128 lanes (lane-dense final matmul/store)
    and optionally cast the matmul weights to bf16 (opt-in fast path).
    Biases stay f32 (added post-accumulation)."""
    wi, bi, wk, _wr, wo, bo = params       # Wr provably dead for zero states
    units = wi.shape[1]
    wo_p = jnp.zeros((units, OUT_PAD), jnp.float32).at[:, :NUM_CLASSES].set(wo)
    bo_p = jnp.zeros((1, OUT_PAD), jnp.float32).at[:, :NUM_CLASSES].set(bo)
    cd = compute_dtype
    return (wi.astype(cd), bi.astype(jnp.float32), wk.astype(cd),
            wo_p.astype(cd), bo_p.astype(jnp.float32))


# ---------------------------------------------------------------------------
# Public forwards
# ---------------------------------------------------------------------------

def euler_reservoir_cell_forward(x, states, params, units, *, max_block_b=512):
    """Exact EulerReservoirCell.forward(inputs, states) -> (output, output)."""
    assert units % 128 == 0, "units must be a multiple of 128 (lane-dense)"
    wi, bi, wk, wr, _, _ = params
    B = x.shape[0]
    Bp, block_b = _batch_blocking(B, max_block_b)
    xp = _pad_batch(x.astype(jnp.float32), Bp)
    sp = _pad_batch(states.astype(jnp.float32), Bp)
    wkr = jnp.concatenate([wk, wr], axis=0)                   # (2U, U)

    weight_elems = IN_FEATURES * units + units + 2 * units * units
    io_row_elems = IN_FEATURES + 2 * units
    out = pl.pallas_call(
        _euler_cell_kernel,
        out_shape=jax.ShapeDtypeStruct((Bp, units), jnp.float32),
        grid=(Bp // block_b,),
        in_specs=[
            pl.BlockSpec((block_b, IN_FEATURES), lambda i: (i, 0)),
            pl.BlockSpec((block_b, units), lambda i: (i, 0)),
            _resident((IN_FEATURES, units)),
            _resident((1, units)),
            _resident((2 * units, units)),
        ],
        out_specs=pl.BlockSpec((block_b, units), lambda i: (i, 0)),
        compiler_params=pltpu.CompilerParams(
            dimension_semantics=("parallel",),
            vmem_limit_bytes=_vmem_limit_bytes(block_b, weight_elems,
                                               io_row_elems),
        ),
    )(xp, sp, wi, bi, wkr)
    out = out[:B]
    return out, out   # the PyTorch module returns (output, output)


def eusn_forward(x_img, prepared_params, units, *, max_block_b=512):
    """x_img: (B, 1, 32, 32) NCHW. prepared_params: from prepare_eusn_params.
    Zero-initial-state EuSN forward; returns logits (B, 28)."""
    assert units % 128 == 0, "units must be a multiple of 128 (lane-dense)"
    wi, bi, wk, wo_p, bo_p = prepared_params
    B = x_img.shape[0]
    x = x_img.reshape(B, -1).astype(wi.dtype)                 # (B, 1024)
    assert x.shape[1] == IN_FEATURES

    Bp, block_b = _batch_blocking(B, max_block_b)
    x = _pad_batch(x, Bp)   # no-op (no HBM copy) unless Bp != B

    weight_elems = (IN_FEATURES * units + units + units * units
                    + units * OUT_PAD + OUT_PAD)
    io_row_elems = IN_FEATURES + OUT_PAD
    out = pl.pallas_call(
        _eusn_model_kernel,
        out_shape=jax.ShapeDtypeStruct((Bp, OUT_PAD), jnp.float32),
        grid=(Bp // block_b,),
        in_specs=[
            pl.BlockSpec((block_b, IN_FEATURES), lambda i: (i, 0)),
            _resident((IN_FEATURES, units)),
            _resident((1, units)),
            _resident((units, units)),
            _resident((units, OUT_PAD)),
            _resident((1, OUT_PAD)),
        ],
        out_specs=pl.BlockSpec((block_b, OUT_PAD), lambda i: (i, 0)),
        compiler_params=pltpu.CompilerParams(
            dimension_semantics=("parallel",),
            vmem_limit_bytes=_vmem_limit_bytes(block_b, weight_elems,
                                               io_row_elems),
        ),
    )(x, wi, bi, wk, wo_p, bo_p)
    return out[:B, :NUM_CLASSES]


# ---------------------------------------------------------------------------
# Parameter init (mirrors the nn.Module init; matrices stored as weight^T)
# ---------------------------------------------------------------------------

def init_params(key, units):
    k_wi, k_bi, k_wk, k_wr, k_wo, k_bo = jax.random.split(key, 6)

    def linear_w(k, fan_in, fan_out):
        bound = 1.0 / jnp.sqrt(jnp.float32(fan_in))
        return jax.random.uniform(k, (fan_in, fan_out), jnp.float32,
                                  -bound, bound)

    def linear_b(k, fan_in, fan_out):
        bound = 1.0 / jnp.sqrt(jnp.float32(fan_in))
        return jax.random.uniform(k, (1, fan_out), jnp.float32, -bound, bound)

    wi = linear_w(k_wi, IN_FEATURES, units)          # input_kernel weight^T
    bi = linear_b(k_bi, IN_FEATURES, units)          # input_kernel bias
    wk = linear_w(k_wk, units, units)                # kernel weight^T (no bias)

    # recurrent_kernel: kaiming_normal_ then antisymmetrize (W - W^T) * 0.5
    std = jnp.sqrt(2.0 / units)
    wr_raw = std * jax.random.normal(k_wr, (units, units), jnp.float32)
    wr = ((wr_raw - wr_raw.T) * 0.5).T               # stored as (in, out)

    wo = linear_w(k_wo, units, NUM_CLASSES)          # readout weight^T
    bo = linear_b(k_bo, units, NUM_CLASSES)          # readout bias
    return wi, bi, wk, wr, wo, bo


# ---------------------------------------------------------------------------
# Pure-JAX references (exact PyTorch forward)
# ---------------------------------------------------------------------------

def _reference_cell(x, states, params):
    wi, bi, wk, wr, _, _ = params
    hin = jnp.tanh(x @ wi + bi)
    net = hin @ wk + states @ wr
    return states + 0.01 * jnp.tanh(net)


def _reference_model(x_img, params, units):
    wi, bi, wk, wr, wo, bo = params
    B = x_img.shape[0]
    x = x_img.reshape(B, -1).astype(jnp.float32)
    states = jnp.zeros((B, units), jnp.float32)
    out = _reference_cell(x, states, params)
    return out @ wo + bo


# ---------------------------------------------------------------------------

if __name__ == "__main__":
    key = jax.random.PRNGKey(0)
    k_param, k_x, k_s, k_x2, k_x3 = jax.random.split(key, 5)

    UNITS = 128          # reservoir size (lane-aligned)
    params = init_params(k_param, UNITS)
    prepared = prepare_eusn_params(params)                  # one-time padding

    # --- small batch: single full-batch block, no padding ------------------
    B = 8
    x_img = jax.random.normal(k_x, (B, 1, 32, 32), jnp.float32)
    logits = jax.block_until_ready(eusn_forward(x_img, prepared, UNITS))
    ref = _reference_model(x_img, params, UNITS)
    assert logits.shape == (B, NUM_CLASSES)
    assert jnp.allclose(logits, ref, atol=1e-4, rtol=1e-4), "model mismatch"

    # --- batch not a multiple of 8: one full-batch block, no pad copy ------
    B2 = 300
    x_img2 = jax.random.normal(k_x2, (B2, 1, 32, 32), jnp.float32)
    logits2 = jax.block_until_ready(eusn_forward(x_img2, prepared, UNITS))
    ref2 = _reference_model(x_img2, params, UNITS)
    assert logits2.shape == (B2, NUM_CLASSES)
    assert jnp.allclose(logits2, ref2, atol=1e-4, rtol=1e-4), "no-pad mismatch"

    # --- large batch: multi-block grid (>= 2 parallel steps for v7x) -------
    B3 = 1024
    x_img3 = jax.random.normal(k_x3, (B3, 1, 32, 32), jnp.float32)
    logits3 = jax.block_until_ready(eusn_forward(x_img3, prepared, UNITS))
    ref3 = _reference_model(x_img3, params, UNITS)
    assert logits3.shape == (B3, NUM_CLASSES)
    assert jnp.allclose(logits3, ref3, atol=1e-4, rtol=1e-4), "grid mismatch"

    # --- opt-in bf16 fast path (precision trade-off, looser tolerance) -----
    prepared_bf16 = prepare_eusn_params(params, compute_dtype=jnp.bfloat16)
    logits_bf = jax.block_until_ready(eusn_forward(x_img, prepared_bf16, UNITS))
    assert jnp.allclose(logits_bf, ref, atol=2e-2, rtol=2e-2), "bf16 mismatch"

    # --- faithful EulerReservoirCell.forward with NONZERO states -----------
    x_flat = x_img.reshape(B, -1)
    states = 0.1 * jax.random.normal(k_s, (B, UNITS), jnp.float32)
    cell_out, cell_out2 = euler_reservoir_cell_forward(x_flat, states,
                                                       params, UNITS)
    cell_out = jax.block_until_ready(cell_out)
    ref_cell = _reference_cell(x_flat, states, params)
    assert cell_out.shape == (B, UNITS)
    assert jnp.allclose(cell_out, ref_cell, atol=1e-4, rtol=1e-4), "cell mismatch"
    assert cell_out2 is cell_out   # module returns (output, output)

    print("KERNEL_OK")
</pallas_src>

<mosaic_0001>
module attributes {stable_mosaic.version = 11 : i64} {
  func.func @_eusn_model_kernel(%arg0: i32, %arg1: memref<8x1024xf32, #tpu.memory_space<vmem>>, %arg2: memref<1024x128xf32, #tpu.memory_space<vmem>>, %arg3: memref<1x128xf32, #tpu.memory_space<vmem>>, %arg4: memref<128x128xf32, #tpu.memory_space<vmem>>, %arg5: memref<128x128xf32, #tpu.memory_space<vmem>>, %arg6: memref<1x128xf32, #tpu.memory_space<vmem>>, %arg7: memref<8x128xf32, #tpu.memory_space<vmem>>) attributes {dimension_semantics = [#tpu.dimension_semantics<parallel>], iteration_bounds = array<i64: 1>, scalar_prefetch = 0 : i64, scratch_operands = 0 : i64, tpu.core_type = #tpu.core_type<tc>, window_params = [{transform_indices = @transform_0, window_bounds = array<i64: 8, 1024>}, {pipeline_mode = #tpu.pipeline_mode<synchronous>, transform_indices = @transform_1, window_bounds = array<i64: 1024, 128>}, {pipeline_mode = #tpu.pipeline_mode<synchronous>, transform_indices = @transform_2, window_bounds = array<i64: 1, 128>}, {pipeline_mode = #tpu.pipeline_mode<synchronous>, transform_indices = @transform_3, window_bounds = array<i64: 128, 128>}, {pipeline_mode = #tpu.pipeline_mode<synchronous>, transform_indices = @transform_4, window_bounds = array<i64: 128, 128>}, {pipeline_mode = #tpu.pipeline_mode<synchronous>, transform_indices = @transform_5, window_bounds = array<i64: 1, 128>}, {transform_indices = @transform_6, window_bounds = array<i64: 8, 128>}]} {
    %c0 = arith.constant 0 : index
    %c0_0 = arith.constant 0 : index
    %0 = vector.load %arg1[%c0, %c0_0] : memref<8x1024xf32, #tpu.memory_space<vmem>>, vector<8x1024xf32>
    %c0_1 = arith.constant 0 : index
    %c0_2 = arith.constant 0 : index
    %1 = vector.load %arg2[%c0_1, %c0_2] : memref<1024x128xf32, #tpu.memory_space<vmem>>, vector<1024x128xf32>
    %cst = arith.constant dense<0.000000e+00> : vector<8x128xf32>
    %2 = tpu.matmul %0, %1, %cst {dimension_numbers = #tpu.dot_dimension_numbers<[1], [0], [0], [1], [0, 0, 1, 1], [], []>} : vector<8x1024xf32>, vector<1024x128xf32>, vector<8x128xf32> -> vector<8x128xf32>
    %c0_3 = arith.constant 0 : index
    %c0_4 = arith.constant 0 : index
    %3 = vector.load %arg3[%c0_3, %c0_4] : memref<1x128xf32, #tpu.memory_space<vmem>>, vector<1x128xf32>
    %4 = vector.broadcast %3 : vector<1x128xf32> to vector<8x128xf32>
    %5 = arith.addf %2, %4 : vector<8x128xf32>
    %6 = math.tanh %5 : vector<8x128xf32>
    %c0_5 = arith.constant 0 : index
    %c0_6 = arith.constant 0 : index
    %7 = vector.load %arg4[%c0_5, %c0_6] : memref<128x128xf32, #tpu.memory_space<vmem>>, vector<128x128xf32>
    %cst_7 = arith.constant dense<0.000000e+00> : vector<8x128xf32>
    %8 = tpu.matmul %6, %7, %cst_7 {dimension_numbers = #tpu.dot_dimension_numbers<[1], [0], [0], [1], [0, 0, 1, 1], [], []>} : vector<8x128xf32>, vector<128x128xf32>, vector<8x128xf32> -> vector<8x128xf32>
    %9 = math.tanh %8 : vector<8x128xf32>
    %cst_8 = arith.constant 0.00999999977 : f32
    %10 = vector.broadcast %cst_8 : f32 to vector<8x128xf32>
    %11 = arith.mulf %10, %9 : vector<8x128xf32>
    %c0_9 = arith.constant 0 : index
    %c0_10 = arith.constant 0 : index
    %12 = vector.load %arg5[%c0_9, %c0_10] : memref<128x128xf32, #tpu.memory_space<vmem>>, vector<128x128xf32>
    %cst_11 = arith.constant dense<0.000000e+00> : vector<8x128xf32>
    %13 = tpu.matmul %11, %12, %cst_11 {dimension_numbers = #tpu.dot_dimension_numbers<[1], [0], [0], [1], [0, 0, 1, 1], [], []>} : vector<8x128xf32>, vector<128x128xf32>, vector<8x128xf32> -> vector<8x128xf32>
    %c0_12 = arith.constant 0 : index
    %c0_13 = arith.constant 0 : index
    %14 = vector.load %arg6[%c0_12, %c0_13] : memref<1x128xf32, #tpu.memory_space<vmem>>, vector<1x128xf32>
    %15 = vector.broadcast %14 : vector<1x128xf32> to vector<8x128xf32>
    %16 = arith.addf %13, %15 : vector<8x128xf32>
    %c0_14 = arith.constant 0 : index
    %c0_15 = arith.constant 0 : index
    %17 = vector.load %arg7[%c0_14, %c0_15] : memref<8x128xf32, #tpu.memory_space<vmem>>, vector<8x128xf32>
    tpu.vector_store %arg7[%c0_14, %c0_15], %16 {strides = array<i32>} : memref<8x128xf32, #tpu.memory_space<vmem>>, vector<8x128xf32>,
    return
  }
  func.func @transform_0(%arg0: i32) -> (i32, i32) {
    %c0_i32 = arith.constant 0 : i32
    %c0_i32_0 = arith.constant 0 : i32
    return %arg0, %c0_i32 : i32, i32
  }
  func.func @transform_1(%arg0: i32) -> (i32, i32) {
    %c0_i32 = arith.constant 0 : i32
    %c0_i32_0 = arith.constant 0 : i32
    %c0_i32_1 = arith.constant 0 : i32
    return %c0_i32, %c0_i32_0 : i32, i32
  }
  func.func @transform_2(%arg0: i32) -> (i32, i32) {
    %c0_i32 = arith.constant 0 : i32
    %c0_i32_0 = arith.constant 0 : i32
    %c0_i32_1 = arith.constant 0 : i32
    return %c0_i32, %c0_i32_0 : i32, i32
  }
  func.func @transform_3(%arg0: i32) -> (i32, i32) {
    %c0_i32 = arith.constant 0 : i32
    %c0_i32_0 = arith.constant 0 : i32
    %c0_i32_1 = arith.constant 0 : i32
    return %c0_i32, %c0_i32_0 : i32, i32
  }
  func.func @transform_4(%arg0: i32) -> (i32, i32) {
    %c0_i32 = arith.constant 0 : i32
    %c0_i32_0 = arith.constant 0 : i32
    %c0_i32_1 = arith.constant 0 : i32
    return %c0_i32, %c0_i32_0 : i32, i32
  }
  func.func @transform_5(%arg0: i32) -> (i32, i32) {
    %c0_i32 = arith.constant 0 : i32
    %c0_i32_0 = arith.constant 0 : i32
    %c0_i32_1 = arith.constant 0 : i32
    return %c0_i32, %c0_i32_0 : i32, i32
  }
  func.func @transform_6(%arg0: i32) -> (i32, i32) {
    %c0_i32 = arith.constant 0 : i32
    %c0_i32_0 = arith.constant 0 : i32
    return %arg0, %c0_i32 : i32, i32
  }
}

</mosaic_0001>

<llo_original>
// kernel: tpu_custom_call.1
$region0: #{tpu_custom_call.1}
  #allocation0 [shape = 'u32[]', space=smem, size = 0x4, offset = 0x4, fixed_abs, tag = 'smem constant byte address 0x4 - core index']
  #allocation1 [shape = 'u32[72,128]{1,0:T(1,128)}', space=vmem, size = 0x9000, scoped, tag = 'internal scratch']
  %s0 = inlined_call_operand.hbm [shape: f32[8,1024], index: 0, kind: input, shape index: {}]
  %s1 = inlined_call_operand.hbm [shape: f32[1024,128], index: 1, kind: input, shape index: {}]
  %s2 = inlined_call_operand.vmem [shape: f32[1,128], index: 2, kind: input, shape index: {}]
  %s3 = inlined_call_operand.hbm [shape: f32[128,128], index: 3, kind: input, shape index: {}]
  %s4 = inlined_call_operand.hbm [shape: f32[128,128], index: 4, kind: input, shape index: {}]
  %s5 = inlined_call_operand.vmem [shape: f32[1,128], index: 5, kind: input, shape index: {}]
  %s6 = inlined_call_operand.hbm [shape: f32[8,128], index: 6, kind: output, shape index: {}]
  %s7 = sld [smem:[#allocation0]]
  $region50: #{tpu_custom_call.1} parent=0
    _
  %s9 = ssub.s32 1, %s7
  %s10 = scalar_select 0, %s9, %s7
  $region1: #{tpu_custom_call.1} parent=0
    #allocation2 [shape = 'u8[32768]{0}', space=vmem, size = 0x8000, scoped, tag = 'input window, operand 0, single buffered']
    #allocation3 [shape = 's32[1]{0}', space=sflag, size = 0x4, scoped, tag = 'scoped memory for tpu_custom_call.1']
    #allocation4 [shape = 's32[1]{0}', space=sflag, size = 0x4, scoped, tag = 'scoped memory for tpu_custom_call.1']
    #allocation5 [shape = 'u8[524288]{0}', space=vmem, size = 0x80000, scoped, tag = 'input window, operand 1, single buffered']
    #allocation6 [shape = 's32[1]{0}', space=sflag, size = 0x4, scoped, tag = 'scoped memory for tpu_custom_call.1']
    #allocation7 [shape = 'u8[65536]{0}', space=vmem, size = 0x10000, scoped, tag = 'input window, operand 3, single buffered']
    #allocation8 [shape = 'u8[65536]{0}', space=vmem, size = 0x10000, scoped, tag = 'input window, operand 4, single buffered']
    #allocation9 [shape = 's32[1]{0}', space=sflag, size = 0x4, scoped, tag = 'scoped memory for tpu_custom_call.1']
    #allocation10 [shape = 'u8[4096]{0}', space=vmem, size = 0x1000, scoped, tag = 'output window, operand 0, single buffered']
    %11 = vsyncpa [#allocation3], 0
    %12 = vsyncpa [#allocation6], 0
    %13 = vsyncpa [#allocation9], 0
    %14 = vsyncpa [#allocation4], 0
    // Predicated region
    $region2: #{tpu_custom_call.1} parent=1 // pred_check
      _
    $region3: #{tpu_custom_call.1} parent=1 // pred_check_branch
      %16 = sbr.rel (0) target = $region5
    $region4: #{tpu_custom_call.1} parent=1 // pred_region
      %18 = vsyncadd [#allocation3], 0
      %s20 = sshll.u32 %s0, 4
      %s21 = int_to_ptr.hbm [resolvable:$true] %s20
      %s22 = sshll.u32 [#allocation2], 4
      %s23 = int_to_ptr.vmem [resolvable:$true] %s22
      %25 = dma.hbm_to_vmem [thread:$0]  %s21, 1024, %s23, [#allocation3]
    $region5: #{tpu_custom_call.1} parent=1 // pred_fallthru
      _
    // Predicated region
    $region6: #{tpu_custom_call.1} parent=1 // pred_check
      _
    $region7: #{tpu_custom_call.1} parent=1 // pred_check_branch
      %27 = sbr.rel (0) target = $region9
    $region8: #{tpu_custom_call.1} parent=1 // pred_region
      %29 = vsyncadd [#allocation6], 0
      %s30 = sshll.u32 %s1, 4
      %s31 = int_to_ptr.hbm [resolvable:$true] %s30
      %s32 = sshll.u32 [#allocation5], 4
      %s33 = int_to_ptr.vmem [resolvable:$true] %s32
      %38 = dma.hbm_to_vmem [thread:$0]  %s31, 16384, %s33, [#allocation6], 128, 128, 8
    $region9: #{tpu_custom_call.1} parent=1 // pred_fallthru
      _
    // Predicated region
    $region10: #{tpu_custom_call.1} parent=1 // pred_check
      _
    $region11: #{tpu_custom_call.1} parent=1 // pred_check_branch
      %40 = sbr.rel (0) target = $region13
    $region12: #{tpu_custom_call.1} parent=1 // pred_region
      _
    $region13: #{tpu_custom_call.1} parent=1 // pred_fallthru
      _
    // Predicated region
    $region14: #{tpu_custom_call.1} parent=1 // pred_check
      _
    $region15: #{tpu_custom_call.1} parent=1 // pred_check_branch
      %42 = sbr.rel (0) target = $region17
    $region16: #{tpu_custom_call.1} parent=1 // pred_region
      %44 = vsyncadd [#allocation6], 0
      %s45 = sshll.u32 %s3, 4
      %s46 = int_to_ptr.hbm [resolvable:$true] %s45
      %s47 = sshll.u32 [#allocation7], 4
      %s48 = int_to_ptr.vmem [resolvable:$true] %s47
      %53 = dma.hbm_to_vmem [thread:$0]  %s46, 2048, %s48, [#allocation6], 128, 128, 8
    $region17: #{tpu_custom_call.1} parent=1 // pred_fallthru
      _
    // Predicated region
    $region18: #{tpu_custom_call.1} parent=1 // pred_check
      _
    $region19: #{tpu_custom_call.1} parent=1 // pred_check_branch
      %55 = sbr.rel (0) target = $region21
    $region20: #{tpu_custom_call.1} parent=1 // pred_region
      %57 = vsyncadd [#allocation9], 0
      %s58 = sshll.u32 %s4, 4
      %s59 = int_to_ptr.hbm [resolvable:$true] %s58
      %s60 = sshll.u32 [#allocation8], 4
      %s61 = int_to_ptr.vmem [resolvable:$true] %s60
      %66 = dma.hbm_to_vmem [thread:$0]  %s59, 2048, %s61, [#allocation9], 128, 128, 8
    $region21: #{tpu_custom_call.1} parent=1 // pred_fallthru
      _
    // Predicated region
    $region22: #{tpu_custom_call.1} parent=1 // pred_check
      _
    $region23: #{tpu_custom_call.1} parent=1 // pred_check_branch
      %68 = sbr.rel (0) target = $region25
    $region24: #{tpu_custom_call.1} parent=1 // pred_region
      _
    $region25: #{tpu_custom_call.1} parent=1 // pred_fallthru
      _
    // Predicated region
    $region26: #{tpu_custom_call.1} parent=1 // pred_check
      _
    $region27: #{tpu_custom_call.1} parent=1 // pred_check_branch
      %70 = sbr.rel (0) target = $region29
    $region28: #{tpu_custom_call.1} parent=1 // pred_region
      %72 = dma.done [#allocation3], 1024
    $region29: #{tpu_custom_call.1} parent=1 // pred_fallthru
      _
    // Predicated region
    $region30: #{tpu_custom_call.1} parent=1 // pred_check
      _
    $region31: #{tpu_custom_call.1} parent=1 // pred_check_branch
      %74 = sbr.rel (0) target = $region33
    $region32: #{tpu_custom_call.1} parent=1 // pred_region
      %76 = dma.done [#allocation6], 16384
    $region33: #{tpu_custom_call.1} parent=1 // pred_fallthru
      _
    // Predicated region
    $region34: #{tpu_custom_call.1} parent=1 // pred_check
      _
    $region35: #{tpu_custom_call.1} parent=1 // pred_check_branch
      %78 = sbr.rel (0) target = $region37
    $region36: #{tpu_custom_call.1} parent=1 // pred_region
      %80 = dma.done [#allocation6], 2048
    $region37: #{tpu_custom_call.1} parent=1 // pred_fallthru
      _
    // Predicated region
    $region38: #{tpu_custom_call.1} parent=1 // pred_check
      _
    $region39: #{tpu_custom_call.1} parent=1 // pred_check_branch
      %82 = sbr.rel (0) target = $region41
    $region40: #{tpu_custom_call.1} parent=1 // pred_region
      %84 = dma.done [#allocation9], 2048
    $region41: #{tpu_custom_call.1} parent=1 // pred_fallthru
      _
    %v85 = vld [vmem:[#allocation2] sm:$0xff]
    %v86 = vld [vmem:[#allocation2 + $0x8] sm:$0xff]
    %v87 = vld [vmem:[#allocation2 + $0x10] sm:$0xff]
    %v88 = vld [vmem:[#allocation2 + $0x18] sm:$0xff]
    %v89 = vld [vmem:[#allocation2 + $0x20] sm:$0xff]
    %v90 = vld [vmem:[#allocation2 + $0x28] sm:$0xff]
    %v91 = vld [vmem:[#allocation2 + $0x30] sm:$0xff]
    %v92 = vld [vmem:[#allocation2 + $0x38] sm:$0xff]
    %v93 = vld [vmem:[#allocation5] sm:$0xff]
    %v94 = vld [vmem:[#allocation5 + $0x8] sm:$0xff]
    %v95 = vld [vmem:[#allocation5 + $0x10] sm:$0xff]
    %v96 = vld [vmem:[#allocation5 + $0x18] sm:$0xff]
    %v97 = vld [vmem:[#allocation5 + $0x20] sm:$0xff]
    %v98 = vld [vmem:[#allocation5 + $0x28] sm:$0xff]
    %v99 = vld [vmem:[#allocation5 + $0x30] sm:$0xff]
    %v100 = vld [vmem:[#allocation5 + $0x38] sm:$0xff]
    %v101 = vld [vmem:[#allocation5 + $0x40] sm:$0xff]
    %v102 = vld [vmem:[#allocation5 + $0x48] sm:$0xff]
    %v103 = vld [vmem:[#allocation5 + $0x50] sm:$0xff]
    %v104 = vld [vmem:[#allocation5 + $0x58] sm:$0xff]
    %v105 = vld [vmem:[#allocation5 + $0x60] sm:$0xff]
    %v106 = vld [vmem:[#allocation5 + $0x68] sm:$0xff]
    %v107 = vld [vmem:[#allocation5 + $0x70] sm:$0xff]
    %v108 = vld [vmem:[#allocation5 + $0x78] sm:$0xff]
    %v109 = vld [vmem:[#allocation5 + $0x80] sm:$0xff]
    %v110 = vld [vmem:[#allocation5 + $0x88] sm:$0xff]
    %v111 = vld [vmem:[#allocation5 + $0x90] sm:$0xff]
    %v112 = vld [vmem:[#allocation5 + $0x98] sm:$0xff]
    %v113 = vld [vmem:[#allocation5 + $0xa0] sm:$0xff]
    %v114 = vld [vmem:[#allocation5 + $0xa8] sm:$0xff]
    %v115 = vld [vmem:[#allocation5 + $0xb0] sm:$0xff]
    %v116 = vld [vmem:[#allocation5 + $0xb8] sm:$0xff]
    %v117 = vld [vmem:[#allocation5 + $0xc0] sm:$0xff]
    %v118 = vld [vmem:[#allocation5 + $0xc8] sm:$0xff]
    %v119 = vld [vmem:[#allocation5 + $0xd0] sm:$0xff]
    %v120 = vld [vmem:[#allocation5 + $0xd8] sm:$0xff]
    %v121 = vld [vmem:[#allocation5 + $0xe0] sm:$0xff]
    %v122 = vld [vmem:[#allocation5 + $0xe8] sm:$0xff]
    %v123 = vld [vmem:[#allocation5 + $0xf0] sm:$0xff]
    %v124 = vld [vmem:[#allocation5 + $0xf8] sm:$0xff]
    %v125 = vld [vmem:[#allocation5 + $0x100] sm:$0xff]
    %v126 = vld [vmem:[#allocation5 + $0x108] sm:$0xff]
    %v127 = vld [vmem:[#allocation5 + $0x110] sm:$0xff]
    %v128 = vld [vmem:[#allocation5 + $0x118] sm:$0xff]
    %v129 = vld [vmem:[#allocation5 + $0x120] sm:$0xff]
    %v130 = vld [vmem:[#allocation5 + $0x128] sm:$0xff]
    %v131 = vld [vmem:[#allocation5 + $0x130] sm:$0xff]
    %v132 = vld [vmem:[#allocation5 + $0x138] sm:$0xff]
    %v133 = vld [vmem:[#allocation5 + $0x140] sm:$0xff]
    %v134 = vld [vmem:[#allocation5 + $0x148] sm:$0xff]
    %v135 = vld [vmem:[#allocation5 + $0x150] sm:$0xff]
    %v136 = vld [vmem:[#allocation5 + $0x158] sm:$0xff]
    %v137 = vld [vmem:[#allocation5 + $0x160] sm:$0xff]
    %v138 = vld [vmem:[#allocation5 + $0x168] sm:$0xff]
    %v139 = vld [vmem:[#allocation5 + $0x170] sm:$0xff]
    %v140 = vld [vmem:[#allocation5 + $0x178] sm:$0xff]
    %v141 = vld [vmem:[#allocation5 + $0x180] sm:$0xff]
    %v142 = vld [vmem:[#allocation5 + $0x188] sm:$0xff]
    %v143 = vld [vmem:[#allocation5 + $0x190] sm:$0xff]
    %v144 = vld [vmem:[#allocation5 + $0x198] sm:$0xff]
    %v145 = vld [vmem:[#allocation5 + $0x1a0] sm:$0xff]
    %v146 = vld [vmem:[#allocation5 + $0x1a8] sm:$0xff]
    %v147 = vld [vmem:[#allocation5 + $0x1b0] sm:$0xff]
    %v148 = vld [vmem:[#allocation5 + $0x1b8] sm:$0xff]
    %v149 = vld [vmem:[#allocation5 + $0x1c0] sm:$0xff]
    %v150 = vld [vmem:[#allocation5 + $0x1c8] sm:$0xff]
    %v151 = vld [vmem:[#allocation5 + $0x1d0] sm:$0xff]
    %v152 = vld [vmem:[#allocation5 + $0x1d8] sm:$0xff]
    %v153 = vld [vmem:[#allocation5 + $0x1e0] sm:$0xff]
    %v154 = vld [vmem:[#allocation5 + $0x1e8] sm:$0xff]
    %v155 = vld [vmem:[#allocation5 + $0x1f0] sm:$0xff]
    %v156 = vld [vmem:[#allocation5 + $0x1f8] sm:$0xff]
    %v157 = vld [vmem:[#allocation5 + $0x200] sm:$0xff]
    %v158 = vld [vmem:[#allocation5 + $0x208] sm:$0xff]
    %v159 = vld [vmem:[#allocation5 + $0x210] sm:$0xff]
    %v160 = vld [vmem:[#allocation5 + $0x218] sm:$0xff]
    %v161 = vld [vmem:[#allocation5 + $0x220] sm:$0xff]
    %v162 = vld [vmem:[#allocation5 + $0x228] sm:$0xff]
    %v163 = vld [vmem:[#allocation5 + $0x230] sm:$0xff]
    %v164 = vld [vmem:[#allocation5 + $0x238] sm:$0xff]
    %v165 = vld [vmem:[#allocation5 + $0x240] sm:$0xff]
    %v166 = vld [vmem:[#allocation5 + $0x248] sm:$0xff]
    %v167 = vld [vmem:[#allocation5 + $0x250] sm:$0xff]
    %v168 = vld [vmem:[#allocation5 + $0x258] sm:$0xff]
    %v169 = vld [vmem:[#allocation5 + $0x260] sm:$0xff]
    %v170 = vld [vmem:[#allocation5 + $0x268] sm:$0xff]
    %v171 = vld [vmem:[#allocation5 + $0x270] sm:$0xff]
    %v172 = vld [vmem:[#allocation5 + $0x278] sm:$0xff]
    %v173 = vld [vmem:[#allocation5 + $0x280] sm:$0xff]
    %v174 = vld [vmem:[#allocation5 + $0x288] sm:$0xff]
    %v175 = vld [vmem:[#allocation5 + $0x290] sm:$0xff]
    %v176 = vld [vmem:[#allocation5 + $0x298] sm:$0xff]
    %v177 = vld [vmem:[#allocation5 + $0x2a0] sm:$0xff]
    %v178 = vld [vmem:[#allocation5 + $0x2a8] sm:$0xff]
    %v179 = vld [vmem:[#allocation5 + $0x2b0] sm:$0xff]
    %v180 = vld [vmem:[#allocation5 + $0x2b8] sm:$0xff]
    %v181 = vld [vmem:[#allocation5 + $0x2c0] sm:$0xff]
    %v182 = vld [vmem:[#allocation5 + $0x2c8] sm:$0xff]
    %v183 = vld [vmem:[#allocation5 + $0x2d0] sm:$0xff]
    %v184 = vld [vmem:[#allocation5 + $0x2d8] sm:$0xff]
    %v185 = vld [vmem:[#allocation5 + $0x2e0] sm:$0xff]
    %v186 = vld [vmem:[#allocation5 + $0x2e8] sm:$0xff]
    %v187 = vld [vmem:[#allocation5 + $0x2f0] sm:$0xff]
    %v188 = vld [vmem:[#allocation5 + $0x2f8] sm:$0xff]
    %v189 = vld [vmem:[#allocation5 + $0x300] sm:$0xff]
    %v190 = vld [vmem:[#allocation5 + $0x308] sm:$0xff]
    %v191 = vld [vmem:[#allocation5 + $0x310] sm:$0xff]
    %v192 = vld [vmem:[#allocation5 + $0x318] sm:$0xff]
    %v193 = vld [vmem:[#allocation5 + $0x320] sm:$0xff]
    %v194 = vld [vmem:[#allocation5 + $0x328] sm:$0xff]
    %v195 = vld [vmem:[#allocation5 + $0x330] sm:$0xff]
    %v196 = vld [vmem:[#allocation5 + $0x338] sm:$0xff]
    %v197 = vld [vmem:[#allocation5 + $0x340] sm:$0xff]
    %v198 = vld [vmem:[#allocation5 + $0x348] sm:$0xff]
    %v199 = vld [vmem:[#allocation5 + $0x350] sm:$0xff]
    %v200 = vld [vmem:[#allocation5 + $0x358] sm:$0xff]
    %v201 = vld [vmem:[#allocation5 + $0x360] sm:$0xff]
    %v202 = vld [vmem:[#allocation5 + $0x368] sm:$0xff]
    %v203 = vld [vmem:[#allocation5 + $0x370] sm:$0xff]
    %v204 = vld [vmem:[#allocation5 + $0x378] sm:$0xff]
    %v205 = vld [vmem:[#allocation5 + $0x380] sm:$0xff]
    %v206 = vld [vmem:[#allocation5 + $0x388] sm:$0xff]
    %v207 = vld [vmem:[#allocation5 + $0x390] sm:$0xff]
    %v208 = vld [vmem:[#allocation5 + $0x398] sm:$0xff]
    %v209 = vld [vmem:[#allocation5 + $0x3a0] sm:$0xff]
    %v210 = vld [vmem:[#allocation5 + $0x3a8] sm:$0xff]
    %v211 = vld [vmem:[#allocation5 + $0x3b0] sm:$0xff]
    %v212 = vld [vmem:[#allocation5 + $0x3b8] sm:$0xff]
    %v213 = vld [vmem:[#allocation5 + $0x3c0] sm:$0xff]
    %v214 = vld [vmem:[#allocation5 + $0x3c8] sm:$0xff]
    %v215 = vld [vmem:[#allocation5 + $0x3d0] sm:$0xff]
    %v216 = vld [vmem:[#allocation5 + $0x3d8] sm:$0xff]
    %v217 = vld [vmem:[#allocation5 + $0x3e0] sm:$0xff]
    %v218 = vld [vmem:[#allocation5 + $0x3e8] sm:$0xff]
    %v219 = vld [vmem:[#allocation5 + $0x3f0] sm:$0xff]
    %v220 = vld [vmem:[#allocation5 + $0x3f8] sm:$0xff]
    %v221 = vld [vmem:[%s2] sm:$0x1]
    %v223 = vperm.slane %v221, 0
    %225 = vmatpush.msra.mxu0 %v108
    %226 = vmatpush.msra.mxu0 %v107
    %227 = vmatpush.msra.mxu0 %v106
    %228 = vmatpush.msra.mxu0 %v105
    %229 = vmatpush.msra.mxu0 %v104
    %230 = vmatpush.msra.mxu0 %v103
    %231 = vmatpush.msra.mxu0 %v102
    %232 = vmatpush.msra.mxu0 %v101
    %233 = vmatpush.msra.mxu0 %v100
    %234 = vmatpush.msra.mxu0 %v99
    %235 = vmatpush.msra.mxu0 %v98
    %236 = vmatpush.msra.mxu0 %v97
    %237 = vmatpush.msra.mxu0 %v96
    %238 = vmatpush.msra.mxu0 %v95
    %239 = vmatpush.msra.mxu0 %v94
    %240 = vmatpush.msra.mxu0 %v93
    %241 = vmatmul.f32.gmra.mxu0 %v85
    %v242 = vpop.f32.mrf.mxu0
    %v243 = vadd.f32 %v223, %v242
    %244 = vdwg.mxu0
    %245 = vmatpush.msra.mxu0 %v124
    %246 = vmatpush.msra.mxu0 %v123
    %247 = vmatpush.msra.mxu0 %v122
    %248 = vmatpush.msra.mxu0 %v121
    %249 = vmatpush.msra.mxu0 %v120
    %250 = vmatpush.msra.mxu0 %v119
    %251 = vmatpush.msra.mxu0 %v118
    %252 = vmatpush.msra.mxu0 %v117
    %253 = vmatpush.msra.mxu0 %v116
    %254 = vmatpush.msra.mxu0 %v115
    %255 = vmatpush.msra.mxu0 %v114
    %256 = vmatpush.msra.mxu0 %v113
    %257 = vmatpush.msra.mxu0 %v112
    %258 = vmatpush.msra.mxu0 %v111
    %259 = vmatpush.msra.mxu0 %v110
    %260 = vmatpush.msra.mxu0 %v109
    %261 = vmatmul.f32.gmra.mxu0 %v86
    %v262 = vpop.f32.mrf.mxu0
    %v263 = vadd.f32 %v243, %v262
    %264 = vdwg.mxu0
    %265 = vmatpush.msra.mxu0 %v140
    %266 = vmatpush.msra.mxu0 %v139
    %267 = vmatpush.msra.mxu0 %v138
    %268 = vmatpush.msra.mxu0 %v137
    %269 = vmatpush.msra.mxu0 %v136
    %270 = vmatpush.msra.mxu0 %v135
    %271 = vmatpush.msra.mxu0 %v134
    %272 = vmatpush.msra.mxu0 %v133
    %273 = vmatpush.msra.mxu0 %v132
    %274 = vmatpush.msra.mxu0 %v131
    %275 = vmatpush.msra.mxu0 %v130
    %276 = vmatpush.msra.mxu0 %v129
    %277 = vmatpush.msra.mxu0 %v128
    %278 = vmatpush.msra.mxu0 %v127
    %279 = vmatpush.msra.mxu0 %v126
    %280 = vmatpush.msra.mxu0 %v125
    %281 = vmatmul.f32.gmra.mxu0 %v87
    %v282 = vpop.f32.mrf.mxu0
    %v283 = vadd.f32 %v263, %v282
    %284 = vdwg.mxu0
    %285 = vmatpush.msra.mxu0 %v156
    %286 = vmatpush.msra.mxu0 %v155
    %287 = vmatpush.msra.mxu0 %v154
    %288 = vmatpush.msra.mxu0 %v153
    %289 = vmatpush.msra.mxu0 %v152
    %290 = vmatpush.msra.mxu0 %v151
    %291 = vmatpush.msra.mxu0 %v150
    %292 = vmatpush.msra.mxu0 %v149
    %293 = vmatpush.msra.mxu0 %v148
    %294 = vmatpush.msra.mxu0 %v147
    %295 = vmatpush.msra.mxu0 %v146
    %296 = vmatpush.msra.mxu0 %v145
    %297 = vmatpush.msra.mxu0 %v144
    %298 = vmatpush.msra.mxu0 %v143
    %299 = vmatpush.msra.mxu0 %v142
    %300 = vmatpush.msra.mxu0 %v141
    %301 = vmatmul.f32.gmra.mxu0 %v88
    %v302 = vpop.f32.mrf.mxu0
    %v303 = vadd.f32 %v283, %v302
    %304 = vdwg.mxu0
    %305 = vmatpush.msra.mxu0 %v172
    %306 = vmatpush.msra.mxu0 %v171
    %307 = vmatpush.msra.mxu0 %v170
    %308 = vmatpush.msra.mxu0 %v169
    %309 = vmatpush.msra.mxu0 %v168
    %310 = vmatpush.msra.mxu0 %v167
    %311 = vmatpush.msra.mxu0 %v166
    %312 = vmatpush.msra.mxu0 %v165
    %313 = vmatpush.msra.mxu0 %v164
    %314 = vmatpush.msra.mxu0 %v163
    %315 = vmatpush.msra.mxu0 %v162
    %316 = vmatpush.msra.mxu0 %v161
    %317 = vmatpush.msra.mxu0 %v160
    %318 = vmatpush.msra.mxu0 %v159
    %319 = vmatpush.msra.mxu0 %v158
    %320 = vmatpush.msra.mxu0 %v157
    %321 = vmatmul.f32.gmra.mxu0 %v89
    %v322 = vpop.f32.mrf.mxu0
    %v323 = vadd.f32 %v303, %v322
    %324 = vdwg.mxu0
    %325 = vmatpush.msra.mxu0 %v188
    %326 = vmatpush.msra.mxu0 %v187
    %327 = vmatpush.msra.mxu0 %v186
    %328 = vmatpush.msra.mxu0 %v185
    %329 = vmatpush.msra.mxu0 %v184
    %330 = vmatpush.msra.mxu0 %v183
    %331 = vmatpush.msra.mxu0 %v182
    %332 = vmatpush.msra.mxu0 %v181
    %333 = vmatpush.msra.mxu0 %v180
    %334 = vmatpush.msra.mxu0 %v179
    %335 = vmatpush.msra.mxu0 %v178
    %336 = vmatpush.msra.mxu0 %v177
    %337 = vmatpush.msra.mxu0 %v176
    %338 = vmatpush.msra.mxu0 %v175
    %339 = vmatpush.msra.mxu0 %v174
    %340 = vmatpush.msra.mxu0 %v173
    %341 = vmatmul.f32.gmra.mxu0 %v90
    %v342 = vpop.f32.mrf.mxu0
    %v343 = vadd.f32 %v323, %v342
    %344 = vdwg.mxu0
    %345 = vmatpush.msra.mxu0 %v204
    %346 = vmatpush.msra.mxu0 %v203
    %347 = vmatpush.msra.mxu0 %v202
    %348 = vmatpush.msra.mxu0 %v201
    %349 = vmatpush.msra.mxu0 %v200
    %350 = vmatpush.msra.mxu0 %v199
    %351 = vmatpush.msra.mxu0 %v198
    %352 = vmatpush.msra.mxu0 %v197
    %353 = vmatpush.msra.mxu0 %v196
    %354 = vmatpush.msra.mxu0 %v195
    %355 = vmatpush.msra.mxu0 %v194
    %356 = vmatpush.msra.mxu0 %v193
    %357 = vmatpush.msra.mxu0 %v192
    %358 = vmatpush.msra.mxu0 %v191
    %359 = vmatpush.msra.mxu0 %v190
    %360 = vmatpush.msra.mxu0 %v189
    %361 = vmatmul.f32.gmra.mxu0 %v91
    %v362 = vpop.f32.mrf.mxu0
    %v363 = vadd.f32 %v343, %v362
    %364 = vdwg.mxu0
    %365 = vmatpush.msra.mxu0 %v220
    %366 = vmatpush.msra.mxu0 %v219
    %367 = vmatpush.msra.mxu0 %v218
    %368 = vmatpush.msra.mxu0 %v217
    %369 = vmatpush.msra.mxu0 %v216
    %370 = vmatpush.msra.mxu0 %v215
    %371 = vmatpush.msra.mxu0 %v214
    %372 = vmatpush.msra.mxu0 %v213
    %373 = vmatpush.msra.mxu0 %v212
    %374 = vmatpush.msra.mxu0 %v211
    %375 = vmatpush.msra.mxu0 %v210
    %376 = vmatpush.msra.mxu0 %v209
    %377 = vmatpush.msra.mxu0 %v208
    %378 = vmatpush.msra.mxu0 %v207
    %379 = vmatpush.msra.mxu0 %v206
    %380 = vmatpush.msra.mxu0 %v205
    %381 = vmatmul.f32.gmra.mxu0 %v92
    %v382 = vpop.f32.mrf.mxu0
    %v383 = vadd.f32 %v363, %v382
    %384 = vdwg.mxu0
    %v385 = vtanh.pop %v383
    %v386 = vld [vmem:[#allocation7] sm:$0xff]
    %v387 = vld [vmem:[#allocation7 + $0x8] sm:$0xff]
    %v388 = vld [vmem:[#allocation7 + $0x10] sm:$0xff]
    %v389 = vld [vmem:[#allocation7 + $0x18] sm:$0xff]
    %v390 = vld [vmem:[#allocation7 + $0x20] sm:$0xff]
    %v391 = vld [vmem:[#allocation7 + $0x28] sm:$0xff]
    %v392 = vld [vmem:[#allocation7 + $0x30] sm:$0xff]
    %v393 = vld [vmem:[#allocation7 + $0x38] sm:$0xff]
    %v394 = vld [vmem:[#allocation7 + $0x40] sm:$0xff]
    %v395 = vld [vmem:[#allocation7 + $0x48] sm:$0xff]
    %v396 = vld [vmem:[#allocation7 + $0x50] sm:$0xff]
    %v397 = vld [vmem:[#allocation7 + $0x58] sm:$0xff]
    %v398 = vld [vmem:[#allocation7 + $0x60] sm:$0xff]
    %v399 = vld [vmem:[#allocation7 + $0x68] sm:$0xff]
    %v400 = vld [vmem:[#allocation7 + $0x70] sm:$0xff]
    %v401 = vld [vmem:[#allocation7 + $0x78] sm:$0xff]
    %402 = vmatpush.msra.mxu0 %v401
    %403 = vmatpush.msra.mxu0 %v400
    %404 = vmatpush.msra.mxu0 %v399
    %405 = vmatpush.msra.mxu0 %v398
    %406 = vmatpush.msra.mxu0 %v397
    %407 = vmatpush.msra.mxu0 %v396
    %408 = vmatpush.msra.mxu0 %v395
    %409 = vmatpush.msra.mxu0 %v394
    %410 = vmatpush.msra.mxu0 %v393
    %411 = vmatpush.msra.mxu0 %v392
    %412 = vmatpush.msra.mxu0 %v391
    %413 = vmatpush.msra.mxu0 %v390
    %414 = vmatpush.msra.mxu0 %v389
    %415 = vmatpush.msra.mxu0 %v388
    %416 = vmatpush.msra.mxu0 %v387
    %417 = vmatpush.msra.mxu0 %v386
    %418 = vmatmul.f32.gmra.mxu0 %v385
    %v419 = vpop.f32.mrf.mxu0
    %v420 = vadd.f32 0.0, %v419
    %421 = vdwg.mxu0
    %v422 = vtanh.pop %v420
    %v423 = vmul.f32 %v422, 0.01
    %v424 = vld [vmem:[#allocation8] sm:$0xff]
    %v425 = vld [vmem:[#allocation8 + $0x8] sm:$0xff]
    %v426 = vld [vmem:[#allocation8 + $0x10] sm:$0xff]
    %v427 = vld [vmem:[#allocation8 + $0x18] sm:$0xff]
    %v428 = vld [vmem:[#allocation8 + $0x20] sm:$0xff]
    %v429 = vld [vmem:[#allocation8 + $0x28] sm:$0xff]
    %v430 = vld [vmem:[#allocation8 + $0x30] sm:$0xff]
    %v431 = vld [vmem:[#allocation8 + $0x38] sm:$0xff]
    %v432 = vld [vmem:[#allocation8 + $0x40] sm:$0xff]
    %v433 = vld [vmem:[#allocation8 + $0x48] sm:$0xff]
    %v434 = vld [vmem:[#allocation8 + $0x50] sm:$0xff]
    %v435 = vld [vmem:[#allocation8 + $0x58] sm:$0xff]
    %v436 = vld [vmem:[#allocation8 + $0x60] sm:$0xff]
    %v437 = vld [vmem:[#allocation8 + $0x68] sm:$0xff]
    %v438 = vld [vmem:[#allocation8 + $0x70] sm:$0xff]
    %v439 = vld [vmem:[#allocation8 + $0x78] sm:$0xff]
    %v440 = vld [vmem:[%s5] sm:$0x1]
    %v442 = vperm.slane %v440, 0
    %444 = vmatpush.msra.mxu0 %v439
    %445 = vmatpush.msra.mxu0 %v438
    %446 = vmatpush.msra.mxu0 %v437
    %447 = vmatpush.msra.mxu0 %v436
    %448 = vmatpush.msra.mxu0 %v435
    %449 = vmatpush.msra.mxu0 %v434
    %450 = vmatpush.msra.mxu0 %v433
    %451 = vmatpush.msra.mxu0 %v432
    %452 = vmatpush.msra.mxu0 %v431
    %453 = vmatpush.msra.mxu0 %v430
    %454 = vmatpush.msra.mxu0 %v429
    %455 = vmatpush.msra.mxu0 %v428
    %456 = vmatpush.msra.mxu0 %v427
    %457 = vmatpush.msra.mxu0 %v426
    %458 = vmatpush.msra.mxu0 %v425
    %459 = vmatpush.msra.mxu0 %v424
    %460 = vmatmul.f32.gmra.mxu0 %v423
    %v461 = vpop.f32.mrf.mxu0
    %v462 = vadd.f32 %v442, %v461
    %463 = vdwg.mxu0
    %464 = vst [vmem:[#allocation10] sm:$0xff] %v462
    // Predicated region
    $region42: #{tpu_custom_call.1} parent=1 // pred_check
      _
    $region43: #{tpu_custom_call.1} parent=1 // pred_check_branch
      %466 = sbr.rel (0) target = $region45
    $region44: #{tpu_custom_call.1} parent=1 // pred_region
      %468 = vsyncadd [#allocation4], 0
      %s470 = sshll.u32 [#allocation10], 4
      %s471 = int_to_ptr.vmem [resolvable:$true] %s470
      %s472 = sshll.u32 %s6, 4
      %s473 = int_to_ptr.hbm [resolvable:$true] %s472
      %475 = dma.vmem_to_hbm [thread:$0]  %s471, 128, %s473, [#allocation4]
    $region45: #{tpu_custom_call.1} parent=1 // pred_fallthru
      _
    // Predicated region
    $region46: #{tpu_custom_call.1} parent=1 // pred_check
      _
    $region47: #{tpu_custom_call.1} parent=1 // pred_check_branch
      %477 = sbr.rel (0) target = $region49
    $region48: #{tpu_custom_call.1} parent=1 // pred_region
      %479 = dma.done [#allocation4], 128
    $region49: #{tpu_custom_call.1} parent=1 // pred_fallthru
      _
    %480 = vsyncpa [#allocation3], 1
    %481 = vsyncpa [#allocation6], 1
    %482 = vsyncpa [#allocation9], 1
    %483 = vsyncpa [#allocation4], 1

</llo_original>
